<compile_context>
chip_gen: v7x
topology: tpu7x:2x2x1
jax: 0.10.0
libtpu: 0.0.40
codegen_flags: <defaults>
</compile_context>

<pallas_src>
import math
from functools import partial

import jax
import jax.numpy as jnp
import numpy as np
from jax.experimental import pallas as pl
from jax.experimental.pallas import tpu as pltpu

_LANES = 512          # output block lane width (multiple of 128); two 256-lane halves
_MAX_TILE_ROWS = 512  # ~1 MiB f32 per output block -> good pipelining granularity
_SUBLANES = 8


def _round_up(x, m):
    return ((x + m - 1) // m) * m


def _box_muller_kernel(mean_ref, dev_ref, bits_ref, out_ref):
    """One (tile_rows, _LANES) block: uint32 random bits -> N(mean, dev) samples."""
    half = bits_ref.shape[1] // 2
    b1 = bits_ref[:, :half]
    b2 = bits_ref[:, half:]

    # top 24 bits -> uniform floats; u1 in (0, 1] (avoids log(0)), u2 in [0, 1)
    inv24 = jnp.float32(1.0 / 16777216.0)
    u1 = ((b1 >> 8).astype(jnp.float32) + 1.0) * inv24
    u2 = (b2 >> 8).astype(jnp.float32) * inv24

    r = jnp.sqrt(jnp.float32(-2.0) * jnp.log(u1))
    theta = jnp.float32(2.0 * math.pi) * u2

    mean = mean_ref[0]
    dev = dev_ref[0]
    # Use BOTH Box-Muller outputs: each uniform pair yields two normals.
    out_ref[:, :half] = r * jnp.cos(theta) * dev + mean
    out_ref[:, half:] = r * jnp.sin(theta) * dev + mean


@partial(jax.jit, static_argnames=("rows", "tile_rows"))
def _sample_flat(mean_arr, dev_arr, bits, rows, tile_rows):
    total_elems = rows * _LANES
    return pl.pallas_call(
        _box_muller_kernel,
        out_shape=jax.ShapeDtypeStruct((rows, _LANES), jnp.float32),
        grid=(rows // tile_rows,),
        in_specs=[
            pl.BlockSpec(memory_space=pltpu.MemorySpace.SMEM),   # mean  (1,)
            pl.BlockSpec(memory_space=pltpu.MemorySpace.SMEM),   # dev   (1,)
            pl.BlockSpec((tile_rows, _LANES), lambda i: (i, 0)),  # random bits
        ],
        out_specs=pl.BlockSpec((tile_rows, _LANES), lambda i: (i, 0)),
        compiler_params=pltpu.CompilerParams(
            dimension_semantics=("parallel",)),
        cost_estimate=pl.CostEstimate(
            flops=10 * total_elems,
            transcendentals=2 * total_elems,   # (log+sqrt+cos+sin) per 2 samples
            bytes_accessed=8 * total_elems,    # 4B bits in + 4B f32 out
        ),
    )(mean_arr, dev_arr, bits)


def normal_sample(size, mean_arr, dev_arr, key):
    """Pallas equivalent of Normal(mean, deviation, do_rsample).forward(size)."""
    if not hasattr(size, "__getitem__"):
        size = [size]
    size = tuple(int(s) for s in size)
    total = int(np.prod(size)) if len(size) > 0 else 1

    rows = _round_up(pl.cdiv(total, _LANES), _SUBLANES)
    tile_rows = min(_MAX_TILE_ROWS, rows)
    rows = _round_up(rows, tile_rows)

    bits = jax.random.bits(key, (rows, _LANES), dtype=jnp.uint32)
    flat = _sample_flat(mean_arr, dev_arr, bits, rows, tile_rows)

    if rows * _LANES == total:
        # no padding -> contiguous reshape only, no slice copy
        return flat.reshape(size)
    return flat.reshape(-1)[:total].reshape(size)


class NormalPallas:
    """Mirror of the PyTorch `Normal` module using the Pallas kernel above."""

    def __init__(self, mean=0.0, deviation=1.0, do_rsample=False):
        # mean / deviation are scalar (shape (1,)) "parameters", as in the module.
        self.mean = jnp.array([mean], dtype=jnp.float32)
        self.deviation = jnp.array([deviation], dtype=jnp.float32)
        # do_rsample only changes the autograd path in PyTorch; forward values identical.
        self.do_rsample = do_rsample

    def __call__(self, size=1, key=None):
        if key is None:
            key = jax.random.PRNGKey(0)
        # Pass parameter arrays directly (no Python-float round-trip -> no retrace
        # when only the values change).
        return normal_sample(size, self.mean, self.deviation, key)


if __name__ == "__main__":
    key = jax.random.PRNGKey(0)

    dist = NormalPallas(mean=0.0, deviation=1.0, do_rsample=False)

    size = (2, 4, 16, 16)  # small TensorSize, as the forward implies
    out = dist(size, key=key)
    out = jax.block_until_ready(out)

    assert out.shape == size, out.shape
    assert out.dtype == jnp.float32, out.dtype
    # loose sanity check on the distribution (mean ~ 0, std ~ 1)
    m = float(jnp.mean(out))
    s = float(jnp.std(out))
    assert abs(m) < 0.2, m
    assert abs(s - 1.0) < 0.2, s
    assert bool(jnp.all(jnp.isfinite(out)))

    print("KERNEL_OK")
</pallas_src>

<mosaic_0001>
module attributes {stable_mosaic.version = 11 : i64} {
  func.func @_box_muller_kernel(%arg0: i32, %arg1: memref<1xf32, #tpu.memory_space<smem>>, %arg2: memref<1xf32, #tpu.memory_space<smem>>, %arg3: memref<8x512xi32, #tpu.memory_space<vmem>>, %arg4: memref<8x512xf32, #tpu.memory_space<vmem>>) attributes {dimension_semantics = [#tpu.dimension_semantics<parallel>], iteration_bounds = array<i64: 1>, scalar_prefetch = 0 : i64, scratch_operands = 0 : i64, tpu.core_type = #tpu.core_type<tc>, window_params = [{transform_indices = @transform_0, window_bounds = array<i64: 1>}, {transform_indices = @transform_1, window_bounds = array<i64: 1>}, {transform_indices = @transform_2, window_bounds = array<i64: 8, 512>}, {transform_indices = @transform_3, window_bounds = array<i64: 8, 512>}]} {
    %c0 = arith.constant 0 : index
    %c0_0 = arith.constant 0 : index
    %0 = vector.load %arg3[%c0, %c0_0] : memref<8x512xi32, #tpu.memory_space<vmem>>, vector<8x256xi32>
    %c0_1 = arith.constant 0 : index
    %c256 = arith.constant 256 : index
    %1 = vector.load %arg3[%c0_1, %c256] : memref<8x512xi32, #tpu.memory_space<vmem>>, vector<8x256xi32>
    %c8_i32 = arith.constant 8 : i32
    %2 = vector.broadcast %c8_i32 : i32 to vector<8x256xi32>
    %3 = arith.shrui %0, %2 : vector<8x256xi32>
    %4 = arith.uitofp %3 : vector<8x256xi32> to vector<8x256xf32>
    %cst = arith.constant 1.000000e+00 : f32
    %5 = vector.broadcast %cst : f32 to vector<8x256xf32>
    %6 = arith.addf %4, %5 : vector<8x256xf32>
    %cst_2 = arith.constant 5.96046448E-8 : f32
    %7 = vector.broadcast %cst_2 : f32 to vector<8x256xf32>
    %8 = arith.mulf %6, %7 : vector<8x256xf32>
    %c8_i32_3 = arith.constant 8 : i32
    %9 = vector.broadcast %c8_i32_3 : i32 to vector<8x256xi32>
    %10 = arith.shrui %1, %9 : vector<8x256xi32>
    %11 = arith.uitofp %10 : vector<8x256xi32> to vector<8x256xf32>
    %cst_4 = arith.constant 5.96046448E-8 : f32
    %12 = vector.broadcast %cst_4 : f32 to vector<8x256xf32>
    %13 = arith.mulf %11, %12 : vector<8x256xf32>
    %14 = math.log %8 : vector<8x256xf32>
    %cst_5 = arith.constant -2.000000e+00 : f32
    %15 = vector.broadcast %cst_5 : f32 to vector<8x256xf32>
    %16 = arith.mulf %15, %14 : vector<8x256xf32>
    %17 = math.sqrt %16 : vector<8x256xf32>
    %cst_6 = arith.constant 6.28318548 : f32
    %18 = vector.broadcast %cst_6 : f32 to vector<8x256xf32>
    %19 = arith.mulf %18, %13 : vector<8x256xf32>
    %c0_7 = arith.constant 0 : index
    %20 = memref.load %arg1[%c0_7] : memref<1xf32, #tpu.memory_space<smem>>
    %c0_8 = arith.constant 0 : index
    %21 = memref.load %arg2[%c0_8] : memref<1xf32, #tpu.memory_space<smem>>
    %22 = math.cos %19 : vector<8x256xf32>
    %23 = arith.mulf %17, %22 : vector<8x256xf32>
    %24 = vector.broadcast %21 : f32 to vector<8x256xf32>
    %25 = arith.mulf %23, %24 : vector<8x256xf32>
    %26 = vector.broadcast %20 : f32 to vector<8x256xf32>
    %27 = arith.addf %25, %26 : vector<8x256xf32>
    %c0_9 = arith.constant 0 : index
    %c0_10 = arith.constant 0 : index
    %28 = vector.load %arg4[%c0_9, %c0_10] : memref<8x512xf32, #tpu.memory_space<vmem>>, vector<8x256xf32>
    tpu.vector_store %arg4[%c0_9, %c0_10], %27 {strides = array<i32>} : memref<8x512xf32, #tpu.memory_space<vmem>>, vector<8x256xf32>,
    %29 = math.sin %19 : vector<8x256xf32>
    %30 = arith.mulf %17, %29 : vector<8x256xf32>
    %31 = vector.broadcast %21 : f32 to vector<8x256xf32>
    %32 = arith.mulf %30, %31 : vector<8x256xf32>
    %33 = vector.broadcast %20 : f32 to vector<8x256xf32>
    %34 = arith.addf %32, %33 : vector<8x256xf32>
    %c0_11 = arith.constant 0 : index
    %c256_12 = arith.constant 256 : index
    %35 = vector.load %arg4[%c0_11, %c256_12] : memref<8x512xf32, #tpu.memory_space<vmem>>, vector<8x256xf32>
    tpu.vector_store %arg4[%c0_11, %c256_12], %34 {strides = array<i32>} : memref<8x512xf32, #tpu.memory_space<vmem>>, vector<8x256xf32>,
    return
  }
  func.func @transform_0(%arg0: i32) -> i32 {
    %c0_i32 = arith.constant 0 : i32
    %c0_i32_0 = arith.constant 0 : i32
    return %c0_i32 : i32
  }
  func.func @transform_1(%arg0: i32) -> i32 {
    %c0_i32 = arith.constant 0 : i32
    %c0_i32_0 = arith.constant 0 : i32
    return %c0_i32 : i32
  }
  func.func @transform_2(%arg0: i32) -> (i32, i32) {
    %c0_i32 = arith.constant 0 : i32
    %c0_i32_0 = arith.constant 0 : i32
    return %arg0, %c0_i32 : i32, i32
  }
  func.func @transform_3(%arg0: i32) -> (i32, i32) {
    %c0_i32 = arith.constant 0 : i32
    %c0_i32_0 = arith.constant 0 : i32
    return %arg0, %c0_i32 : i32, i32
  }
}

</mosaic_0001>

<llo_original>
// kernel: _sample_flat.1
$region0: #{_sample_flat.1}
  #allocation0 [shape = 'u32[]', space=smem, size = 0x4, offset = 0x4, fixed_abs, tag = 'smem constant byte address 0x4 - core index']
  #allocation1 [shape = 'u32[144,128]{1,0:T(1,128)}', space=vmem, size = 0x12000, scoped, tag = 'internal scratch']
  #allocation2 [shape = 'f32[1]{0:T(128)S(6)}', space=smem, size = 0x200, scoped, tag = 'scoped memory for _sample_flat.1']
  #allocation3 [shape = 'f32[1]{0:T(128)S(6)}', space=smem, size = 0x200, scoped, tag = 'scoped memory for _sample_flat.1']
  %s0 = inlined_call_operand.<no memory space> [shape: f32[1], index: 0, kind: input, shape index: {}]
  %s1 = inlined_call_operand.<no memory space> [shape: f32[1], index: 1, kind: input, shape index: {}]
  %s2 = inlined_call_operand.hbm [shape: u32[8,512], index: 2, kind: input, shape index: {}]
  %s3 = inlined_call_operand.hbm [shape: f32[8,512], index: 3, kind: output, shape index: {}]
  %s4 = sld [smem:[#allocation0]]
  $region26: #{_sample_flat.1} parent=0
    _
  %s6 = ssub.s32 1, %s4
  %s7 = scalar_select 0, %s6, %s4
  %8 = sst [smem:[#allocation2]] %s0
  %9 = sst [smem:[#allocation3]] %s1
  $region1: #{_sample_flat.1} parent=0
    #allocation4 [shape = 'u8[16384]{0}', space=vmem, size = 0x4000, scoped, tag = 'input window, operand 2, single buffered']
    #allocation5 [shape = 's32[1]{0}', space=sflag, size = 0x4, scoped, tag = 'scoped memory for _sample_flat.1']
    #allocation6 [shape = 's32[1]{0}', space=sflag, size = 0x4, scoped, tag = 'scoped memory for _sample_flat.1']
    #allocation7 [shape = 'u8[16384]{0}', space=vmem, size = 0x4000, scoped, tag = 'output window, operand 0, single buffered']
    %10 = vsyncpa [#allocation5], 0
    %11 = vsyncpa [#allocation6], 0
    // Predicated region
    $region2: #{_sample_flat.1} parent=1 // pred_check
      _
    $region3: #{_sample_flat.1} parent=1 // pred_check_branch
      %13 = sbr.rel (0) target = $region5
    $region4: #{_sample_flat.1} parent=1 // pred_region
      _
    $region5: #{_sample_flat.1} parent=1 // pred_fallthru
      _
    // Predicated region
    $region6: #{_sample_flat.1} parent=1 // pred_check
      _
    $region7: #{_sample_flat.1} parent=1 // pred_check_branch
      %15 = sbr.rel (0) target = $region9
    $region8: #{_sample_flat.1} parent=1 // pred_region
      _
    $region9: #{_sample_flat.1} parent=1 // pred_fallthru
      _
    // Predicated region
    $region10: #{_sample_flat.1} parent=1 // pred_check
      _
    $region11: #{_sample_flat.1} parent=1 // pred_check_branch
      %17 = sbr.rel (0) target = $region13
    $region12: #{_sample_flat.1} parent=1 // pred_region
      %s19 = ssub.s32 512, 512
      %20 = vsyncadd [#allocation5], %s19
      %s22 = sshll.u32 [#allocation4], 4
      %s23 = int_to_ptr.vmem [resolvable:$true] %s22
      %25 = dma.hbm_to_vmem [thread:$0]  %s2, 512, %s23, [#allocation5]
    $region13: #{_sample_flat.1} parent=1 // pred_fallthru
      _
    // Predicated region
    $region14: #{_sample_flat.1} parent=1 // pred_check
      _
    $region15: #{_sample_flat.1} parent=1 // pred_check_branch
      %27 = sbr.rel (0) target = $region17
    $region16: #{_sample_flat.1} parent=1 // pred_region
      %28 = dma.done [#allocation5], 512
    $region17: #{_sample_flat.1} parent=1 // pred_fallthru
      _
    %v29 = vld [vmem:[#allocation4] sm:$0xff]
    %v30 = vld [vmem:[#allocation4 + $0x8] sm:$0xff]
    %v31 = vld [vmem:[#allocation4 + $0x10] sm:$0xff]
    %v32 = vld [vmem:[#allocation4 + $0x18] sm:$0xff]
    %v33 = vshrl.u32 %v29, 8
    %v34 = vshrl.u32 %v30, 8
    %v35 = vshrl.u32 %v33, 16
    %v36 = vand.u32 %v33, 65535
    %v37 = vcvt.s32.f32 %v35
    %v38 = vmul.f32 %v37, 65536.0
    %v39 = vcvt.s32.f32 %v36
    %v40 = vadd.f32 %v38, %v39
    %v41 = vshrl.u32 %v34, 16
    %v42 = vand.u32 %v34, 65535
    %v43 = vcvt.s32.f32 %v41
    %v44 = vmul.f32 %v43, 65536.0
    %v45 = vcvt.s32.f32 %v42
    %v46 = vadd.f32 %v44, %v45
    %v47 = vadd.f32 %v40, 1.0
    %v48 = vadd.f32 %v46, 1.0
    %v49 = vmul.f32 %v47, 5.9604645e-08
    %v50 = vmul.f32 %v48, 5.9604645e-08
    %v51 = vshrl.u32 %v31, 8
    %v52 = vshrl.u32 %v32, 8
    %v53 = vshrl.u32 %v51, 16
    %v54 = vand.u32 %v51, 65535
    %v55 = vcvt.s32.f32 %v53
    %v56 = vmul.f32 %v55, 65536.0
    %v57 = vcvt.s32.f32 %v54
    %v58 = vadd.f32 %v56, %v57
    %v59 = vshrl.u32 %v52, 16
    %v60 = vand.u32 %v52, 65535
    %v61 = vcvt.s32.f32 %v59
    %v62 = vmul.f32 %v61, 65536.0
    %v63 = vcvt.s32.f32 %v60
    %v64 = vadd.f32 %v62, %v63
    %v65 = vmul.f32 %v58, 5.9604645e-08
    %v66 = vmul.f32 %v64, 5.9604645e-08
    %v67 = vlog2.pop %v49
    %v68 = vmul.f32 %v67, 0.6931472
    %v69 = vlog2.pop %v50
    %v70 = vmul.f32 %v69, 0.6931472
    %v71 = vmul.f32 %v68, -2.0
    %v72 = vmul.f32 %v70, -2.0
    %v73 = vrsqrt.pop %v71
    %v74 = vmul.f32 %v71, %v73
    %vm75 = vcmp.eq.f32.partialorder %v71, inf
    %v76 = vsel %vm75, %v71, %v74
    %vm77 = vcmp.eq.f32.partialorder %v71, 0.0
    %v78 = vand.u32 %v71, 2147483648
    %v79 = vsel %vm77, %v78, %v76
    %v80 = vrsqrt.pop %v72
    %v81 = vmul.f32 %v72, %v80
    %vm82 = vcmp.eq.f32.partialorder %v72, inf
    %v83 = vsel %vm82, %v72, %v81
    %vm84 = vcmp.eq.f32.partialorder %v72, 0.0
    %v85 = vand.u32 %v72, 2147483648
    %v86 = vsel %vm84, %v85, %v83
    %v87 = vmul.f32 %v65, 6.2831855
    %v88 = vmul.f32 %v66, 6.2831855
    %s89 = sld [smem:[#allocation2]]
    %s90 = sld [smem:[#allocation3]]
    %v91 = vand.u32 2147483647, %v87
    %vm92 = vcmp.le.f32.partialorder %v91, 0.7853982
    %vm93 = vcmp.lt.s32.totalorder %v87, 0
    %v94 = vand.u32 %v87, 2139095040
    %v95 = vshrl.u32 %v94, 23
    %v96 = vsub.s32 %v95, 127
    %v97 = vand.u32 2147483647, %v87
    %v98 = vand.u32 %v97, 8388607
    %v99 = vor.u32 %v98, 8388608
    %v100 = vsub.s32 0, %v99
    %v101 = vadd.s32 %v96, 1
    %vm102 = vcmp.gt.s32.totalorder %v101, 0
    %v103 = vsel %vm102, %v101, 0
    %v104 = vshrl.u32 %v103, 5
    %v105 = vand.u32 %v103, 31
    %v106 = vsub.s32 32, %v105
    %v107 = vshrl.u32 683565275, %v106
    %v108 = vshll.u32 683565275, %v105
    %v109 = vshrl.u32 2475754826, %v106
    %v110 = vor.u32 %v108, %v109
    %v111 = vshll.u32 2475754826, %v105
    %v112 = vshrl.u32 2131351028, %v106
    %v113 = vor.u32 %v111, %v112
    %v114 = vshll.u32 2131351028, %v105
    %v115 = vshrl.u32 2102212464, %v106
    %v116 = vor.u32 %v114, %v115
    %v117 = vshll.u32 2102212464, %v105
    %v118 = vshrl.u32 920167782, %v106
    %v119 = vor.u32 %v117, %v118
    %v120 = vshll.u32 920167782, %v105
    %v121 = vshrl.u32 1326507024, %v106
    %v122 = vor.u32 %v120, %v121
    %vm123 = vcmp.lt.s32.totalorder %v104, 1
    %vm124 = vcmp.lt.s32.totalorder %v104, 2
    %vm125 = vcmp.lt.s32.totalorder %v104, 3
    %vm126 = vcmp.lt.s32.totalorder %v104, 4
    %v127 = vsel %vm123, %v107, %v110
    %v128 = vsel %vm126, %v116, 2102212464
    %v129 = vsel %vm125, %v113, %v128
    %v130 = vsel %vm124, %v127, %v129
    %v131 = vsel %vm123, %v110, %v113
    %v132 = vsel %vm126, %v119, 920167782
    %v133 = vsel %vm125, %v116, %v132
    %v134 = vsel %vm124, %v131, %v133
    %v135 = vsel %vm123, %v113, %v116
    %v136 = vsel %vm126, %v122, 1326507024
    %v137 = vsel %vm125, %v119, %v136
    %v138 = vsel %vm124, %v135, %v137
    %v139 = vshll.u32 %v99, 8
    %v140 = vmul.u32.u64.compose %v139, %v138
    %v141 = vextract.low.u32 %v140
    %v142 = vextract.high.u32 %v140
    %v143 = vmul.u32.u64.compose %v139, %v134
    %v144 = vextract.low.u32 %v143
    %v145 = vextract.high.u32 %v143
    %v146 = vmul.u32 %v139, %v130
    %v147 = vadd.s32 %v142, %v144
    %vm148 = vc.u32 %v142, %v144
    %v149 = vadd.s32 %v145, 1
    %v150 = vsel %vm148, %v149, %v145
    %v151 = vadd.s32 %v146, %v150
    %v152 = vadd.s32 %v151, 536870912
    %v153 = vshrl.u32 %v152, 30
    %v154 = vshll.u32 %v153, 30
    %v155 = vsub.s32 %v151, %v154
    %vm156 = vcmp.lt.s32.totalorder %v155, 0
    %v157 = vsub.s32 0, %v155
    %v158 = vsel %vm156, %v157, %v155
    %v159 = vclz %v158
    %v160 = vsub.s32 %v159, 2
    %vm161 = vcmp.gt.s32.totalorder 0, %v160
    %v162 = vsel %vm161, 0, %v160
    %v163 = vsub.s32 32, %v162
    %v164 = vshll.u32 %v155, %v162
    %v165 = vshrl.u32 %v147, %v163
    %v166 = vor.u32 %v164, %v165
    %v167 = vsub.s32 4294967266, %v162
    %v168 = vadd.s32 %v167, 127
    %v169 = vshll.u32 %v168, 23
    %v170 = vor.u32 4788187, %v169
    %v171 = vand.u32 2147483647, %v170
    %v173 = vcvt.s32.f32 %v166
    %v174 = vmul.f32 %v173, %v171
    %v175 = vxor.u32 %v174, 2147483648
    %v176 = vsel %vm93, %v175, %v174
    %v177 = vsub.s32 4, %v153
    %v178 = vsel %vm93, %v177, %v153
    %v179 = vsel %vm92, %v87, %v176
    %v180 = vsel %vm92, 0, %v178
    %v181 = vcosq.f32.pop %v179
    %v182 = vsinq.f32.pop %v179
    %vm183 = vweird.f32 %v87
    %v184 = vand.u32 %v180, 3
    %vm185 = vcmp.lt.s32.totalorder %v184, 2
    %vm186 = vcmp.eq.s32.totalorder %v184, 0
    %v187 = vxor.u32 %v182, 2147483648
    %v188 = vsel %vm186, %v181, %v187
    %vm189 = vcmp.eq.s32.totalorder %v184, 2
    %v190 = vxor.u32 %v181, 2147483648
    %v191 = vsel %vm189, %v190, %v182
    %v192 = vsel %vm185, %v188, %v191
    %v193 = vsel %vm183, nan, %v192
    %v194 = vand.u32 2147483647, %v88
    %vm195 = vcmp.le.f32.partialorder %v194, 0.7853982
    %vm196 = vcmp.lt.s32.totalorder %v88, 0
    %v197 = vand.u32 %v88, 2139095040
    %v198 = vshrl.u32 %v197, 23
    %v199 = vsub.s32 %v198, 127
    %v200 = vand.u32 2147483647, %v88
    %v201 = vand.u32 %v200, 8388607
    %v202 = vor.u32 %v201, 8388608
    %v203 = vsub.s32 0, %v202
    %v204 = vadd.s32 %v199, 1
    %vm205 = vcmp.gt.s32.totalorder %v204, 0
    %v206 = vsel %vm205, %v204, 0
    %v207 = vshrl.u32 %v206, 5
    %v208 = vand.u32 %v206, 31
    %v209 = vsub.s32 32, %v208
    %v210 = vshrl.u32 683565275, %v209
    %v211 = vshll.u32 683565275, %v208
    %v212 = vshrl.u32 2475754826, %v209
    %v213 = vor.u32 %v211, %v212
    %v214 = vshll.u32 2475754826, %v208
    %v215 = vshrl.u32 2131351028, %v209
    %v216 = vor.u32 %v214, %v215
    %v217 = vshll.u32 2131351028, %v208
    %v218 = vshrl.u32 2102212464, %v209
    %v219 = vor.u32 %v217, %v218
    %v220 = vshll.u32 2102212464, %v208
    %v221 = vshrl.u32 920167782, %v209
    %v222 = vor.u32 %v220, %v221
    %v223 = vshll.u32 920167782, %v208
    %v224 = vshrl.u32 1326507024, %v209
    %v225 = vor.u32 %v223, %v224
    %vm226 = vcmp.lt.s32.totalorder %v207, 1
    %vm227 = vcmp.lt.s32.totalorder %v207, 2
    %vm228 = vcmp.lt.s32.totalorder %v207, 3
    %vm229 = vcmp.lt.s32.totalorder %v207, 4
    %v230 = vsel %vm226, %v210, %v213
    %v231 = vsel %vm229, %v219, 2102212464
    %v232 = vsel %vm228, %v216, %v231
    %v233 = vsel %vm227, %v230, %v232
    %v234 = vsel %vm226, %v213, %v216
    %v235 = vsel %vm229, %v222, 920167782
    %v236 = vsel %vm228, %v219, %v235
    %v237 = vsel %vm227, %v234, %v236
    %v238 = vsel %vm226, %v216, %v219
    %v239 = vsel %vm229, %v225, 1326507024
    %v240 = vsel %vm228, %v222, %v239
    %v241 = vsel %vm227, %v238, %v240
    %v242 = vshll.u32 %v202, 8
    %v243 = vmul.u32.u64.compose %v242, %v241
    %v244 = vextract.low.u32 %v243
    %v245 = vextract.high.u32 %v243
    %v246 = vmul.u32.u64.compose %v242, %v237
    %v247 = vextract.low.u32 %v246
    %v248 = vextract.high.u32 %v246
    %v249 = vmul.u32 %v242, %v233
    %v250 = vadd.s32 %v245, %v247
    %vm251 = vc.u32 %v245, %v247
    %v252 = vadd.s32 %v248, 1
    %v253 = vsel %vm251, %v252, %v248
    %v254 = vadd.s32 %v249, %v253
    %v255 = vadd.s32 %v254, 536870912
    %v256 = vshrl.u32 %v255, 30
    %v257 = vshll.u32 %v256, 30
    %v258 = vsub.s32 %v254, %v257
    %vm259 = vcmp.lt.s32.totalorder %v258, 0
    %v260 = vsub.s32 0, %v258
    %v261 = vsel %vm259, %v260, %v258
    %v262 = vclz %v261
    %v263 = vsub.s32 %v262, 2
    %vm264 = vcmp.gt.s32.totalorder 0, %v263
    %v265 = vsel %vm264, 0, %v263
    %v266 = vsub.s32 32, %v265
    %v267 = vshll.u32 %v258, %v265
    %v268 = vshrl.u32 %v250, %v266
    %v269 = vor.u32 %v267, %v268
    %v270 = vsub.s32 4294967266, %v265
    %v271 = vadd.s32 %v270, 127
    %v272 = vshll.u32 %v271, 23
    %v273 = vor.u32 4788187, %v272
    %v274 = vand.u32 2147483647, %v273
    %v276 = vcvt.s32.f32 %v269
    %v277 = vmul.f32 %v276, %v274
    %v278 = vxor.u32 %v277, 2147483648
    %v279 = vsel %vm196, %v278, %v277
    %v280 = vsub.s32 4, %v256
    %v281 = vsel %vm196, %v280, %v256
    %v282 = vsel %vm195, %v88, %v279
    %v283 = vsel %vm195, 0, %v281
    %v284 = vcosq.f32.pop %v282
    %v285 = vsinq.f32.pop %v282
    %vm286 = vweird.f32 %v88
    %v287 = vand.u32 %v283, 3
    %vm288 = vcmp.lt.s32.totalorder %v287, 2
    %vm289 = vcmp.eq.s32.totalorder %v287, 0
    %v290 = vxor.u32 %v285, 2147483648
    %v291 = vsel %vm289, %v284, %v290
    %vm292 = vcmp.eq.s32.totalorder %v287, 2
    %v293 = vxor.u32 %v284, 2147483648
    %v294 = vsel %vm292, %v293, %v285
    %v295 = vsel %vm288, %v291, %v294
    %v296 = vsel %vm286, nan, %v295
    %v297 = vmul.f32 %v79, %v193
    %v298 = vmul.f32 %v86, %v296
    %v299 = vstv %s90
    %v300 = vmul.f32 %v297, %v299
    %v301 = vmul.f32 %v298, %v299
    %v302 = vstv %s89
    %v303 = vadd.f32 %v300, %v302
    %v304 = vadd.f32 %v301, %v302
    %305 = vst [vmem:[#allocation7] sm:$0xff] %v303
    %306 = vst [vmem:[#allocation7 + $0x8] sm:$0xff] %v304
    %v307 = vand.u32 2147483647, %v87
    %vm308 = vcmp.le.f32.partialorder %v307, 0.7853982
    %vm309 = vcmp.lt.s32.totalorder %v87, 0
    %v310 = vand.u32 %v87, 2139095040
    %v311 = vshrl.u32 %v310, 23
    %v312 = vsub.s32 %v311, 127
    %v313 = vand.u32 2147483647, %v87
    %v314 = vand.u32 %v313, 8388607
    %v315 = vor.u32 %v314, 8388608
    %v316 = vsub.s32 0, %v315
    %v317 = vadd.s32 %v312, 1
    %vm318 = vcmp.gt.s32.totalorder %v317, 0
    %v319 = vsel %vm318, %v317, 0
    %v320 = vshrl.u32 %v319, 5
    %v321 = vand.u32 %v319, 31
    %v322 = vsub.s32 32, %v321
    %v323 = vshrl.u32 683565275, %v322
    %v324 = vshll.u32 683565275, %v321
    %v325 = vshrl.u32 2475754826, %v322
    %v326 = vor.u32 %v324, %v325
    %v327 = vshll.u32 2475754826, %v321
    %v328 = vshrl.u32 2131351028, %v322
    %v329 = vor.u32 %v327, %v328
    %v330 = vshll.u32 2131351028, %v321
    %v331 = vshrl.u32 2102212464, %v322
    %v332 = vor.u32 %v330, %v331
    %v333 = vshll.u32 2102212464, %v321
    %v334 = vshrl.u32 920167782, %v322
    %v335 = vor.u32 %v333, %v334
    %v336 = vshll.u32 920167782, %v321
    %v337 = vshrl.u32 1326507024, %v322
    %v338 = vor.u32 %v336, %v337
    %vm339 = vcmp.lt.s32.totalorder %v320, 1
    %vm340 = vcmp.lt.s32.totalorder %v320, 2
    %vm341 = vcmp.lt.s32.totalorder %v320, 3
    %vm342 = vcmp.lt.s32.totalorder %v320, 4
    %v343 = vsel %vm339, %v323, %v326
    %v344 = vsel %vm342, %v332, 2102212464
    %v345 = vsel %vm341, %v329, %v344
    %v346 = vsel %vm340, %v343, %v345
    %v347 = vsel %vm339, %v326, %v329
    %v348 = vsel %vm342, %v335, 920167782
    %v349 = vsel %vm341, %v332, %v348
    %v350 = vsel %vm340, %v347, %v349
    %v351 = vsel %vm339, %v329, %v332
    %v352 = vsel %vm342, %v338, 1326507024
    %v353 = vsel %vm341, %v335, %v352
    %v354 = vsel %vm340, %v351, %v353
    %v355 = vshll.u32 %v315, 8
    %v356 = vmul.u32.u64.compose %v355, %v354
    %v357 = vextract.low.u32 %v356
    %v358 = vextract.high.u32 %v356
    %v359 = vmul.u32.u64.compose %v355, %v350
    %v360 = vextract.low.u32 %v359
    %v361 = vextract.high.u32 %v359
    %v362 = vmul.u32 %v355, %v346
    %v363 = vadd.s32 %v358, %v360
    %vm364 = vc.u32 %v358, %v360
    %v365 = vadd.s32 %v361, 1
    %v366 = vsel %vm364, %v365, %v361
    %v367 = vadd.s32 %v362, %v366
    %v368 = vadd.s32 %v367, 536870912
    %v369 = vshrl.u32 %v368, 30
    %v370 = vshll.u32 %v369, 30
    %v371 = vsub.s32 %v367, %v370
    %vm372 = vcmp.lt.s32.totalorder %v371, 0
    %v373 = vsub.s32 0, %v371
    %v374 = vsel %vm372, %v373, %v371
    %v375 = vclz %v374
    %v376 = vsub.s32 %v375, 2
    %vm377 = vcmp.gt.s32.totalorder 0, %v376
    %v378 = vsel %vm377, 0, %v376
    %v379 = vsub.s32 32, %v378
    %v380 = vshll.u32 %v371, %v378
    %v381 = vshrl.u32 %v363, %v379
    %v382 = vor.u32 %v380, %v381
    %v383 = vsub.s32 4294967266, %v378
    %v384 = vadd.s32 %v383, 127
    %v385 = vshll.u32 %v384, 23
    %v386 = vor.u32 4788187, %v385
    %v387 = vand.u32 2147483647, %v386
    %v389 = vcvt.s32.f32 %v382
    %v390 = vmul.f32 %v389, %v387
    %v391 = vxor.u32 %v390, 2147483648
    %v392 = vsel %vm309, %v391, %v390
    %v393 = vsub.s32 4, %v369
    %v394 = vsel %vm309, %v393, %v369
    %v395 = vsel %vm308, %v87, %v392
    %v396 = vsel %vm308, 0, %v394
    %v397 = vcosq.f32.pop %v395
    %v398 = vsinq.f32.pop %v395
    %vm399 = vweird.f32 %v87
    %v400 = vadd.s32 %v396, 3
    %v401 = vand.u32 %v400, 3
    %vm402 = vcmp.lt.s32.totalorder %v401, 2
    %vm403 = vcmp.eq.s32.totalorder %v401, 0
    %v404 = vxor.u32 %v398, 2147483648
    %v405 = vsel %vm403, %v397, %v404
    %vm406 = vcmp.eq.s32.totalorder %v401, 2
    %v407 = vxor.u32 %v397, 2147483648
    %v408 = vsel %vm406, %v407, %v398
    %v409 = vsel %vm402, %v405, %v408
    %v410 = vsel %vm399, nan, %v409
    %v411 = vand.u32 2147483647, %v88
    %vm412 = vcmp.le.f32.partialorder %v411, 0.7853982
    %vm413 = vcmp.lt.s32.totalorder %v88, 0
    %v414 = vand.u32 %v88, 2139095040
    %v415 = vshrl.u32 %v414, 23
    %v416 = vsub.s32 %v415, 127
    %v417 = vand.u32 2147483647, %v88
    %v418 = vand.u32 %v417, 8388607
    %v419 = vor.u32 %v418, 8388608
    %v420 = vsub.s32 0, %v419
    %v421 = vadd.s32 %v416, 1
    %vm422 = vcmp.gt.s32.totalorder %v421, 0
    %v423 = vsel %vm422, %v421, 0
    %v424 = vshrl.u32 %v423, 5
    %v425 = vand.u32 %v423, 31
    %v426 = vsub.s32 32, %v425
    %v427 = vshrl.u32 683565275, %v426
    %v428 = vshll.u32 683565275, %v425
    %v429 = vshrl.u32 2475754826, %v426
    %v430 = vor.u32 %v428, %v429
    %v431 = vshll.u32 2475754826, %v425
    %v432 = vshrl.u32 2131351028, %v426
    %v433 = vor.u32 %v431, %v432
    %v434 = vshll.u32 2131351028, %v425
    %v435 = vshrl.u32 2102212464, %v426
    %v436 = vor.u32 %v434, %v435
    %v437 = vshll.u32 2102212464, %v425
    %v438 = vshrl.u32 920167782, %v426
    %v439 = vor.u32 %v437, %v438
    %v440 = vshll.u32 920167782, %v425
    %v441 = vshrl.u32 1326507024, %v426
    %v442 = vor.u32 %v440, %v441
    %vm443 = vcmp.lt.s32.totalorder %v424, 1
    %vm444 = vcmp.lt.s32.totalorder %v424, 2
    %vm445 = vcmp.lt.s32.totalorder %v424, 3
    %vm446 = vcmp.lt.s32.totalorder %v424, 4
    %v447 = vsel %vm443, %v427, %v430
    %v448 = vsel %vm446, %v436, 2102212464
    %v449 = vsel %vm445, %v433, %v448
    %v450 = vsel %vm444, %v447, %v449
    %v451 = vsel %vm443, %v430, %v433
    %v452 = vsel %vm446, %v439, 920167782
    %v453 = vsel %vm445, %v436, %v452
    %v454 = vsel %vm444, %v451, %v453
    %v455 = vsel %vm443, %v433, %v436
    %v456 = vsel %vm446, %v442, 1326507024
    %v457 = vsel %vm445, %v439, %v456
    %v458 = vsel %vm444, %v455, %v457
    %v459 = vshll.u32 %v419, 8
    %v460 = vmul.u32.u64.compose %v459, %v458
    %v461 = vextract.low.u32 %v460
    %v462 = vextract.high.u32 %v460
    %v463 = vmul.u32.u64.compose %v459, %v454
    %v464 = vextract.low.u32 %v463
    %v465 = vextract.high.u32 %v463
    %v466 = vmul.u32 %v459, %v450
    %v467 = vadd.s32 %v462, %v464
    %vm468 = vc.u32 %v462, %v464
    %v469 = vadd.s32 %v465, 1
    %v470 = vsel %vm468, %v469, %v465
    %v471 = vadd.s32 %v466, %v470
    %v472 = vadd.s32 %v471, 536870912
    %v473 = vshrl.u32 %v472, 30
    %v474 = vshll.u32 %v473, 30
    %v475 = vsub.s32 %v471, %v474
    %vm476 = vcmp.lt.s32.totalorder %v475, 0
    %v477 = vsub.s32 0, %v475
    %v478 = vsel %vm476, %v477, %v475
    %v479 = vclz %v478
    %v480 = vsub.s32 %v479, 2
    %vm481 = vcmp.gt.s32.totalorder 0, %v480
    %v482 = vsel %vm481, 0, %v480
    %v483 = vsub.s32 32, %v482
    %v484 = vshll.u32 %v475, %v482
    %v485 = vshrl.u32 %v467, %v483
    %v486 = vor.u32 %v484, %v485
    %v487 = vsub.s32 4294967266, %v482
    %v488 = vadd.s32 %v487, 127
    %v489 = vshll.u32 %v488, 23
    %v490 = vor.u32 4788187, %v489
    %v491 = vand.u32 2147483647, %v490
    %v493 = vcvt.s32.f32 %v486
    %v494 = vmul.f32 %v493, %v491
    %v495 = vxor.u32 %v494, 2147483648
    %v496 = vsel %vm413, %v495, %v494
    %v497 = vsub.s32 4, %v473
    %v498 = vsel %vm413, %v497, %v473
    %v499 = vsel %vm412, %v88, %v496
    %v500 = vsel %vm412, 0, %v498
    %v501 = vcosq.f32.pop %v499
    %v502 = vsinq.f32.pop %v499
    %vm503 = vweird.f32 %v88
    %v504 = vadd.s32 %v500, 3
    %v505 = vand.u32 %v504, 3
    %vm506 = vcmp.lt.s32.totalorder %v505, 2
    %vm507 = vcmp.eq.s32.totalorder %v505, 0
    %v508 = vxor.u32 %v502, 2147483648
    %v509 = vsel %vm507, %v501, %v508
    %vm510 = vcmp.eq.s32.totalorder %v505, 2
    %v511 = vxor.u32 %v501, 2147483648
    %v512 = vsel %vm510, %v511, %v502
    %v513 = vsel %vm506, %v509, %v512
    %v514 = vsel %vm503, nan, %v513
    %v515 = vmul.f32 %v79, %v410
    %v516 = vmul.f32 %v86, %v514
    %v517 = vmul.f32 %v515, %v299
    %v518 = vmul.f32 %v516, %v299
    %v519 = vadd.f32 %v517, %v302
    %v520 = vadd.f32 %v518, %v302
    %521 = vst [vmem:[#allocation7 + $0x10] sm:$0xff] %v519
    %522 = vst [vmem:[#allocation7 + $0x18] sm:$0xff] %v520
    // Predicated region
    $region18: #{_sample_flat.1} parent=1 // pred_check
      _
    $region19: #{_sample_flat.1} parent=1 // pred_check_branch
      %524 = sbr.rel (0) target = $region21
    $region20: #{_sample_flat.1} parent=1 // pred_region
      %s526 = ssub.s32 512, 512
      %527 = vsyncadd [#allocation6], %s526
      %s529 = sshll.u32 [#allocation7], 4
      %s530 = int_to_ptr.vmem [resolvable:$true] %s529
      %532 = dma.vmem_to_hbm [thread:$0]  %s530, 512, %s3, [#allocation6]
    $region21: #{_sample_flat.1} parent=1 // pred_fallthru
      _
    // Predicated region
    $region22: #{_sample_flat.1} parent=1 // pred_check
      _
    $region23: #{_sample_flat.1} parent=1 // pred_check_branch
      %534 = sbr.rel (0) target = $region25
    $region24: #{_sample_flat.1} parent=1 // pred_region
      %535 = dma.done [#allocation6], 512
    $region25: #{_sample_flat.1} parent=1 // pred_fallthru
      _
    %536 = vsyncpa [#allocation5], 1
    %537 = vsyncpa [#allocation6], 1

</llo_original>
